<compile_context>
chip_gen: v7x
topology: tpu7x:2x2x1
jax: 0.10.0
libtpu: 0.0.40
codegen_flags: <defaults>
</compile_context>

<pallas_src>
import jax
import jax.numpy as jnp
from jax import lax
from jax.experimental import pallas as pl
from jax.experimental.pallas import tpu as pltpu


def _round_up(x, m):
    return ((x + m - 1) // m) * m


_TILE_CAP = 1024  # rows per grid step; large tiles amortize per-step pipeline overhead


def _make_kernel(num_action):
    A = num_action

    def kernel(s_ref, wt_ref, bt_ref, wh_ref, bh_ref, out_ref):
        # trunk: Linear(input_dim -> lat_pad) + ReLU  (padded latent cols stay exactly 0)
        s = s_ref[...]
        h = jnp.dot(s, wt_ref[...], preferred_element_type=jnp.float32) + bt_ref[...]
        h = jnp.maximum(h, 0.0)

        # fused heads: one MXU pass over packed [w_pi | w_v | 0-pad] weights.
        # head lanes: 0..A-1 = pi logits, lane A = value pre-activation, rest exactly 0.
        head = jnp.dot(h, wh_ref[...], preferred_element_type=jnp.float32) + bh_ref[...]

        col = lax.broadcasted_iota(jnp.int32, head.shape, 1)
        pi_mask = col < A

        # lane-dense log-softmax over the whole head width (no narrow slices)
        m = jnp.max(jnp.where(pi_mask, head, -jnp.inf), axis=1, keepdims=True)
        z = head - m
        e = jnp.where(pi_mask, jnp.exp(z), 0.0)
        ssum = jnp.sum(e, axis=1, keepdims=True)
        inv = pl.reciprocal(ssum, approx=False)   # EUP; exact so pi == exp(logpi) to 1e-5
        log_ssum = jnp.log(ssum)

        logpi_lanes = jnp.where(pi_mask, z - log_ssum, 0.0)   # lanes 0..A-1, 0 elsewhere
        pi_lanes = e * inv                                    # lanes 0..A-1, 0 elsewhere
        v_lane = jnp.tanh(jnp.where(col == A, head, 0.0))     # lane A, 0 elsewhere (tanh(0)=0)

        # one XLU roll: pi -> lanes A..2A-1, tanh(V) -> lane 2A; wrapped lanes are zeros.
        shifted = pltpu.roll(pi_lanes + v_lane, shift=A, axis=1)

        # single lane-dense unmasked store of the composed slab [logpi | pi | V | 0-pad]
        out_ref[...] = logpi_lanes + shifted

    return kernel


def pack_params(params):
    """One-time packing: pad latent to a multiple of 128 and fuse pi/value heads.

    The packed head width also serves as the lane-dense output slab width, so it is
    rounded up from 2*A + 1 (logpi | pi | V) to a multiple of 128.
    """
    w_trunk = params["w_trunk"]          # (input_dim, latent)
    b_trunk = params["b_trunk"]          # (1, latent)
    w_pi = params["w_pi"]                # (latent, A)
    b_pi = params["b_pi"]                # (1, A)
    w_v = params["w_v"]                  # (latent, 1)
    b_v = params["b_v"]                  # (1, 1)

    latent = w_trunk.shape[1]
    A = w_pi.shape[1]
    lat_pad = _round_up(latent, 128)             # 200 -> 256
    head_w = _round_up(2 * A + 1, 128)           # 33  -> 128 (doubles as output width)

    wt = jnp.pad(w_trunk, ((0, 0), (0, lat_pad - latent)))
    bt = jnp.pad(b_trunk, ((0, 0), (0, lat_pad - latent)))

    wh = jnp.zeros((lat_pad, head_w), jnp.float32)
    wh = wh.at[:latent, :A].set(w_pi)
    wh = wh.at[:latent, A:A + 1].set(w_v)

    bh = jnp.zeros((1, head_w), jnp.float32)
    bh = bh.at[:, :A].set(b_pi)
    bh = bh.at[:, A:A + 1].set(b_v)

    return dict(w_trunk=wt, b_trunk=bt, w_heads=wh, b_heads=bh, num_action=A)


def mymodel_forward(s, packed):
    """s: (B, input_dim) float32. packed: output of pack_params."""
    B, input_dim = s.shape
    wt, bt = packed["w_trunk"], packed["b_trunk"]
    wh, bh = packed["w_heads"], packed["b_heads"]
    A = int(packed["num_action"])
    lat_pad = wt.shape[1]
    head_w = wh.shape[1]

    # Batch tiling: large tiles amortize per-step overhead, but keep >= 2 grid steps
    # whenever possible so ("parallel",) can shard across v7x's two TensorCores.
    B8 = _round_up(B, 8)
    if B8 >= 16:
        tile_b = min(_round_up(pl.cdiv(B8, 2), 8), _TILE_CAP)
    else:
        tile_b = B8
    B_pad = _round_up(B8, tile_b)
    s_in = jnp.pad(s, ((0, B_pad - B), (0, 0))) if B_pad != B else s
    grid = (B_pad // tile_b,)

    out = pl.pallas_call(
        _make_kernel(A),
        out_shape=jax.ShapeDtypeStruct((B_pad, head_w), jnp.float32),
        grid=grid,
        in_specs=[
            pl.BlockSpec((tile_b, input_dim), lambda i: (i, 0)),   # activations: batch-tiled
            # weights/biases: constant index_maps -> no re-DMA, VMEM-resident across steps
            pl.BlockSpec((input_dim, lat_pad), lambda i: (0, 0)),
            pl.BlockSpec((1, lat_pad), lambda i: (0, 0)),
            pl.BlockSpec((lat_pad, head_w), lambda i: (0, 0)),
            pl.BlockSpec((1, head_w), lambda i: (0, 0)),
        ],
        out_specs=pl.BlockSpec((tile_b, head_w), lambda i: (i, 0)),
        compiler_params=pltpu.CompilerParams(
            dimension_semantics=("parallel",)),
    )(s_in, wt, bt, wh, bh)

    logpi = out[:B, :A]
    pi = out[:B, A:2 * A]
    V = out[:B, 2 * A:2 * A + 1]
    return dict(logpi=logpi, pi=pi, V=V)


def init_params(key, input_dim, num_action, latent_dim=200):
    ks = jax.random.split(key, 6)

    def lin(kw, kb, fan_in, fan_out):
        bound = 1.0 / jnp.sqrt(fan_in)
        w = jax.random.uniform(kw, (fan_in, fan_out), jnp.float32, -bound, bound)
        b = jax.random.uniform(kb, (1, fan_out), jnp.float32, -bound, bound)
        return w, b

    w_trunk, b_trunk = lin(ks[0], ks[1], input_dim, latent_dim)
    w_pi, b_pi = lin(ks[2], ks[3], latent_dim, num_action)
    w_v, b_v = lin(ks[4], ks[5], latent_dim, 1)
    return dict(w_trunk=w_trunk, b_trunk=b_trunk,
                w_pi=w_pi, b_pi=b_pi, w_v=w_v, b_v=b_v)


if __name__ == "__main__":
    key = jax.random.PRNGKey(0)
    k_params, k_input = jax.random.split(key)

    batch = 16          # >= 16 rows -> grid of 2 steps (exercises megacore sharding path)
    input_dim = 32
    num_action = 16
    latent_dim = 200

    params = init_params(k_params, input_dim, num_action, latent_dim)
    packed = pack_params(params)
    s = jax.random.normal(k_input, (batch, input_dim), jnp.float32)

    out = mymodel_forward(s, packed)
    jax.block_until_ready(out)

    # reference check in plain JAX (same math path as the PyTorch module)
    h = jnp.maximum(s @ params["w_trunk"] + params["b_trunk"], 0.0)
    logits = h @ params["w_pi"] + params["b_pi"]
    logpi_ref = jax.nn.log_softmax(logits, axis=1)
    V_ref = jnp.tanh(h @ params["w_v"] + params["b_v"])
    assert out["logpi"].shape == (batch, num_action)
    assert out["pi"].shape == (batch, num_action)
    assert out["V"].shape == (batch, 1)
    assert jnp.allclose(out["logpi"], logpi_ref, atol=1e-5)
    assert jnp.allclose(out["pi"], jnp.exp(logpi_ref), atol=1e-5)
    assert jnp.allclose(out["V"], V_ref, atol=1e-5)

    print("KERNEL_OK")
</pallas_src>

<mosaic_0001>
module attributes {stable_mosaic.version = 11 : i64} {
  func.func @kernel(%arg0: i32, %arg1: memref<8x32xf32, #tpu.memory_space<vmem>>, %arg2: memref<32x256xf32, #tpu.memory_space<vmem>>, %arg3: memref<1x256xf32, #tpu.memory_space<vmem>>, %arg4: memref<256x128xf32, #tpu.memory_space<vmem>>, %arg5: memref<1x128xf32, #tpu.memory_space<vmem>>, %arg6: memref<8x128xf32, #tpu.memory_space<vmem>>) attributes {dimension_semantics = [#tpu.dimension_semantics<parallel>], iteration_bounds = array<i64: 2>, scalar_prefetch = 0 : i64, scratch_operands = 0 : i64, tpu.core_type = #tpu.core_type<tc>, window_params = [{transform_indices = @transform_0, window_bounds = array<i64: 8, 32>}, {pipeline_mode = #tpu.pipeline_mode<synchronous>, transform_indices = @transform_1, window_bounds = array<i64: 32, 256>}, {pipeline_mode = #tpu.pipeline_mode<synchronous>, transform_indices = @transform_2, window_bounds = array<i64: 1, 256>}, {pipeline_mode = #tpu.pipeline_mode<synchronous>, transform_indices = @transform_3, window_bounds = array<i64: 256, 128>}, {pipeline_mode = #tpu.pipeline_mode<synchronous>, transform_indices = @transform_4, window_bounds = array<i64: 1, 128>}, {transform_indices = @transform_5, window_bounds = array<i64: 8, 128>}]} {
    %c0 = arith.constant 0 : index
    %c0_0 = arith.constant 0 : index
    %0 = vector.load %arg1[%c0, %c0_0] : memref<8x32xf32, #tpu.memory_space<vmem>>, vector<8x32xf32>
    %c0_1 = arith.constant 0 : index
    %c0_2 = arith.constant 0 : index
    %1 = vector.load %arg2[%c0_1, %c0_2] : memref<32x256xf32, #tpu.memory_space<vmem>>, vector<32x256xf32>
    %cst = arith.constant dense<0.000000e+00> : vector<8x256xf32>
    %2 = tpu.matmul %0, %1, %cst {dimension_numbers = #tpu.dot_dimension_numbers<[1], [0], [0], [1], [0, 0, 1, 1], [], []>} : vector<8x32xf32>, vector<32x256xf32>, vector<8x256xf32> -> vector<8x256xf32>
    %c0_3 = arith.constant 0 : index
    %c0_4 = arith.constant 0 : index
    %3 = vector.load %arg3[%c0_3, %c0_4] : memref<1x256xf32, #tpu.memory_space<vmem>>, vector<1x256xf32>
    %4 = vector.broadcast %3 : vector<1x256xf32> to vector<8x256xf32>
    %5 = arith.addf %2, %4 : vector<8x256xf32>
    %cst_5 = arith.constant 0.000000e+00 : f32
    %6 = vector.broadcast %cst_5 : f32 to vector<8x256xf32>
    %7 = arith.maximumf %5, %6 : vector<8x256xf32>
    %c0_6 = arith.constant 0 : index
    %c0_7 = arith.constant 0 : index
    %8 = vector.load %arg4[%c0_6, %c0_7] : memref<256x128xf32, #tpu.memory_space<vmem>>, vector<256x128xf32>
    %cst_8 = arith.constant dense<0.000000e+00> : vector<8x128xf32>
    %9 = tpu.matmul %7, %8, %cst_8 {dimension_numbers = #tpu.dot_dimension_numbers<[1], [0], [0], [1], [0, 0, 1, 1], [], []>} : vector<8x256xf32>, vector<256x128xf32>, vector<8x128xf32> -> vector<8x128xf32>
    %c0_9 = arith.constant 0 : index
    %c0_10 = arith.constant 0 : index
    %10 = vector.load %arg5[%c0_9, %c0_10] : memref<1x128xf32, #tpu.memory_space<vmem>>, vector<1x128xf32>
    %11 = vector.broadcast %10 : vector<1x128xf32> to vector<8x128xf32>
    %12 = arith.addf %9, %11 : vector<8x128xf32>
    %13 = tpu.iota {dimensions = array<i32: 1>} : vector<8x128xi32>
    %c16_i32 = arith.constant 16 : i32
    %14 = vector.broadcast %c16_i32 : i32 to vector<8x128xi32>
    %15 = arith.cmpi slt, %13, %14 : vector<8x128xi32>
    %cst_11 = arith.constant 0xFF800000 : f32
    %16 = vector.broadcast %cst_11 : f32 to vector<8x128xf32>
    %17 = arith.select %15, %12, %16 : vector<8x128xi1>, vector<8x128xf32>
    %cst_12 = arith.constant dense<0xFF800000> : vector<8xf32>
    %18 = vector.multi_reduction <maximumf>, %17, %cst_12 [1] : vector<8x128xf32> to vector<8xf32>
    %19 = vector.shape_cast %18 : vector<8xf32> to vector<8x1xf32>
    %20 = vector.broadcast %19 : vector<8x1xf32> to vector<8x128xf32>
    %21 = arith.subf %12, %20 : vector<8x128xf32>
    %22 = math.exp %21 : vector<8x128xf32>
    %cst_13 = arith.constant 0.000000e+00 : f32
    %23 = vector.broadcast %cst_13 : f32 to vector<8x128xf32>
    %24 = arith.select %15, %22, %23 : vector<8x128xi1>, vector<8x128xf32>
    %cst_14 = arith.constant dense<0.000000e+00> : vector<8xf32>
    %25 = vector.multi_reduction <add>, %24, %cst_14 [1] : vector<8x128xf32> to vector<8xf32>
    %26 = vector.shape_cast %25 : vector<8xf32> to vector<8x1xf32>
    %27 = tpu.reciprocal %26 : vector<8x1xf32> -> vector<8x1xf32>
    %28 = math.log %26 : vector<8x1xf32>
    %29 = vector.broadcast %28 : vector<8x1xf32> to vector<8x128xf32>
    %30 = arith.subf %21, %29 : vector<8x128xf32>
    %cst_15 = arith.constant 0.000000e+00 : f32
    %31 = vector.broadcast %cst_15 : f32 to vector<8x128xf32>
    %32 = arith.select %15, %30, %31 : vector<8x128xi1>, vector<8x128xf32>
    %33 = vector.broadcast %27 : vector<8x1xf32> to vector<8x128xf32>
    %34 = arith.mulf %24, %33 : vector<8x128xf32>
    %c16_i32_16 = arith.constant 16 : i32
    %35 = vector.broadcast %c16_i32_16 : i32 to vector<8x128xi32>
    %36 = arith.cmpi eq, %13, %35 : vector<8x128xi32>
    %cst_17 = arith.constant 0.000000e+00 : f32
    %37 = vector.broadcast %cst_17 : f32 to vector<8x128xf32>
    %38 = arith.select %36, %12, %37 : vector<8x128xi1>, vector<8x128xf32>
    %39 = math.tanh %38 : vector<8x128xf32>
    %40 = arith.addf %34, %39 : vector<8x128xf32>
    %c16_i32_18 = arith.constant 16 : i32
    %41 = tpu.dynamic_rotate %40 by %c16_i32_18 dim 1 : vector<8x128xf32>, i32 -> vector<8x128xf32>
    %42 = arith.addf %32, %41 : vector<8x128xf32>
    %c0_19 = arith.constant 0 : index
    %c0_20 = arith.constant 0 : index
    %43 = vector.load %arg6[%c0_19, %c0_20] : memref<8x128xf32, #tpu.memory_space<vmem>>, vector<8x128xf32>
    tpu.vector_store %arg6[%c0_19, %c0_20], %42 {strides = array<i32>} : memref<8x128xf32, #tpu.memory_space<vmem>>, vector<8x128xf32>,
    return
  }
  func.func @transform_0(%arg0: i32) -> (i32, i32) {
    %c0_i32 = arith.constant 0 : i32
    %c0_i32_0 = arith.constant 0 : i32
    return %arg0, %c0_i32 : i32, i32
  }
  func.func @transform_1(%arg0: i32) -> (i32, i32) {
    %c0_i32 = arith.constant 0 : i32
    %c0_i32_0 = arith.constant 0 : i32
    %c0_i32_1 = arith.constant 0 : i32
    return %c0_i32, %c0_i32_0 : i32, i32
  }
  func.func @transform_2(%arg0: i32) -> (i32, i32) {
    %c0_i32 = arith.constant 0 : i32
    %c0_i32_0 = arith.constant 0 : i32
    %c0_i32_1 = arith.constant 0 : i32
    return %c0_i32, %c0_i32_0 : i32, i32
  }
  func.func @transform_3(%arg0: i32) -> (i32, i32) {
    %c0_i32 = arith.constant 0 : i32
    %c0_i32_0 = arith.constant 0 : i32
    %c0_i32_1 = arith.constant 0 : i32
    return %c0_i32, %c0_i32_0 : i32, i32
  }
  func.func @transform_4(%arg0: i32) -> (i32, i32) {
    %c0_i32 = arith.constant 0 : i32
    %c0_i32_0 = arith.constant 0 : i32
    %c0_i32_1 = arith.constant 0 : i32
    return %c0_i32, %c0_i32_0 : i32, i32
  }
  func.func @transform_5(%arg0: i32) -> (i32, i32) {
    %c0_i32 = arith.constant 0 : i32
    %c0_i32_0 = arith.constant 0 : i32
    return %arg0, %c0_i32 : i32, i32
  }
}

</mosaic_0001>

<llo_original>
// kernel: tpu_custom_call.1
$region0: #{tpu_custom_call.1}
  #allocation0 [shape = 'u32[]', space=smem, size = 0x4, offset = 0x4, fixed_abs, tag = 'smem constant byte address 0x4 - core index']
  #allocation1 [shape = 'u32[144,128]{1,0:T(1,128)}', space=vmem, size = 0x12000, scoped, tag = 'internal scratch']
  %s0 = inlined_call_operand.hbm [shape: f32[16,32], index: 0, kind: input, shape index: {}]
  %s1 = inlined_call_operand.hbm [shape: f32[32,256], index: 1, kind: input, shape index: {}]
  %s2 = inlined_call_operand.vmem [shape: f32[1,256], index: 2, kind: input, shape index: {}]
  %s3 = inlined_call_operand.hbm [shape: f32[256,128], index: 3, kind: input, shape index: {}]
  %s4 = inlined_call_operand.vmem [shape: f32[1,128], index: 4, kind: input, shape index: {}]
  %s5 = inlined_call_operand.hbm [shape: f32[16,128], index: 5, kind: output, shape index: {}]
  %s6 = sld [smem:[#allocation0]]
  $region65: #{tpu_custom_call.1} parent=0
    _
  %s8 = ssub.s32 1, %s6
  %s9 = scalar_select 0, %s8, %s6
  $region1: #{tpu_custom_call.1} parent=0
    #allocation2 [shape = 'u8[8192]{0}', space=vmem, size = 0x2000, scoped, tag = 'input window, operand 0']
    #allocation3 [shape = 's32[2]{0}', space=sflag, size = 0x8, scoped, tag = 'scoped memory for tpu_custom_call.1']
    #allocation4 [shape = 's32[2]{0}', space=sflag, size = 0x8, scoped, tag = 'scoped memory for tpu_custom_call.1']
    #allocation5 [shape = 'u8[32768]{0}', space=vmem, size = 0x8000, scoped, tag = 'input window, operand 1, single buffered']
    #allocation6 [shape = 's32[1]{0}', space=sflag, size = 0x4, scoped, tag = 'scoped memory for tpu_custom_call.1']
    #allocation7 [shape = 'u8[131072]{0}', space=vmem, size = 0x20000, scoped, tag = 'input window, operand 3, single buffered']
    #allocation8 [shape = 'u8[8192]{0}', space=vmem, size = 0x2000, scoped, tag = 'output window, operand 0']
    %10 = vsyncpa [#allocation3], 0
    %s11 = scalar_lea.sflag [#allocation3], 1
    %12 = vsyncpa %s11, 0
    %13 = vsyncpa [#allocation6], 0
    %14 = vsyncpa [#allocation4], 0
    %s15 = scalar_lea.sflag [#allocation4], 1
    %16 = vsyncpa %s15, 0
    loop: start=0, step=1, limit=4
    $region2: #{tpu_custom_call.1} parent=1 // loop_pre_header
      _
    $region3: #{tpu_custom_call.1} parent=1 // loop_header
      %s18 = sphi 0, %s22
      %p19 = scmp.ge.s32.totalorder %s18, 4
      %s28 = sphi 0, %s30
      %s31 = sphi 0, %s28
      %s32 = sphi 0, %s31
      %s48 = sphi 0, %s32
      %s52 = sphi 0, %s52
      %s54 = sphi 0, %s52
      %s55 = sphi 0, %s54
      %s69 = sphi 0, %s55
      %s73 = sphi 0, %s73
      %s75 = sphi 0, %s73
      %s76 = sphi 0, %s75
      %s90 = sphi 0, %s76
      %s94 = sphi 0, %s94
      %s96 = sphi 0, %s94
      %s97 = sphi 0, %s96
      %s111 = sphi 0, %s97
      %s115 = sphi 0, %s115
      %s117 = sphi 0, %s115
      %s118 = sphi 0, %s117
      %s132 = sphi 0, %s118
      %s138 = sphi 0, %s140
      %s141 = sphi 0, %s138
      %s142 = sphi 0, %s141
      %s158 = sphi 0, %s142
    $region4: #{tpu_custom_call.1} parent=1 // loop_header_branch
      %21 = sbr.rel (%p19) target = $region8
    $region5: #{tpu_custom_call.1} parent=1 // loop_body
      %s23 = ssub.s32 %s18, 1
      %s24 = ssub.s32 %s18, 2
      %s25 = sadd.s32 %s18, 1
      %s26 = ssub.s32 %s18, %s25
      %p27 = scmp.eq.s32.totalorder %s26, 0
      %s29 = sadd.s32 %s28, 1
      %s30 = scalar_select %p27, %s28, %s29
      %p33 = pneg %p27
      %p34 = scmp.eq.s32.totalorder %s18, 1
      %p35 = por %p33, %p34
      %p36 = scmp.ne.s32.totalorder %s28, %s31
      %p37 = scmp.eq.s32.totalorder %s18, 0
      %p38 = por %p36, %p37
      %p39 = scmp.ne.s32.totalorder %s28, %s31
      %p40 = scmp.eq.s32.totalorder %s23, 1
      %p41 = por %p39, %p40
      %p42 = scmp.ne.s32.totalorder %s31, %s32
      %p43 = scmp.eq.s32.totalorder %s23, 0
      %p44 = por %p42, %p43
      %p45 = scmp.ne.s32.totalorder %s31, %s32
      %p46 = scmp.eq.s32.totalorder %s24, 1
      %p47 = por %p45, %p46
      %p49 = scmp.ne.s32.totalorder %s32, %s48
      %p50 = scmp.eq.s32.totalorder %s24, 0
      %p51 = por %p49, %p50
      %s53 = sadd.s32 %s52, 1
      %p56 = scmp.eq.s32.totalorder %s18, 1
      %p57 = scmp.ne.s32.totalorder %s52, %s54
      %p58 = scmp.eq.s32.totalorder %s18, 0
      %p59 = por %p57, %p58
      %p60 = scmp.ne.s32.totalorder %s52, %s54
      %p61 = scmp.eq.s32.totalorder %s23, 1
      %p62 = por %p60, %p61
      %p63 = scmp.ne.s32.totalorder %s54, %s55
      %p64 = scmp.eq.s32.totalorder %s23, 0
      %p65 = por %p63, %p64
      %p66 = scmp.ne.s32.totalorder %s54, %s55
      %p67 = scmp.eq.s32.totalorder %s24, 1
      %p68 = por %p66, %p67
      %p70 = scmp.ne.s32.totalorder %s55, %s69
      %p71 = scmp.eq.s32.totalorder %s24, 0
      %p72 = por %p70, %p71
      %s74 = sadd.s32 %s73, 1
      %p77 = scmp.eq.s32.totalorder %s18, 1
      %p78 = scmp.ne.s32.totalorder %s73, %s75
      %p79 = scmp.eq.s32.totalorder %s18, 0
      %p80 = por %p78, %p79
      %p81 = scmp.ne.s32.totalorder %s73, %s75
      %p82 = scmp.eq.s32.totalorder %s23, 1
      %p83 = por %p81, %p82
      %p84 = scmp.ne.s32.totalorder %s75, %s76
      %p85 = scmp.eq.s32.totalorder %s23, 0
      %p86 = por %p84, %p85
      %p87 = scmp.ne.s32.totalorder %s75, %s76
      %p88 = scmp.eq.s32.totalorder %s24, 1
      %p89 = por %p87, %p88
      %p91 = scmp.ne.s32.totalorder %s76, %s90
      %p92 = scmp.eq.s32.totalorder %s24, 0
      %p93 = por %p91, %p92
      %s95 = sadd.s32 %s94, 1
      %p98 = scmp.eq.s32.totalorder %s18, 1
      %p99 = scmp.ne.s32.totalorder %s94, %s96
      %p100 = scmp.eq.s32.totalorder %s18, 0
      %p101 = por %p99, %p100
      %p102 = scmp.ne.s32.totalorder %s94, %s96
      %p103 = scmp.eq.s32.totalorder %s23, 1
      %p104 = por %p102, %p103
      %p105 = scmp.ne.s32.totalorder %s96, %s97
      %p106 = scmp.eq.s32.totalorder %s23, 0
      %p107 = por %p105, %p106
      %p108 = scmp.ne.s32.totalorder %s96, %s97
      %p109 = scmp.eq.s32.totalorder %s24, 1
      %p110 = por %p108, %p109
      %p112 = scmp.ne.s32.totalorder %s97, %s111
      %p113 = scmp.eq.s32.totalorder %s24, 0
      %p114 = por %p112, %p113
      %s116 = sadd.s32 %s115, 1
      %p119 = scmp.eq.s32.totalorder %s18, 1
      %p120 = scmp.ne.s32.totalorder %s115, %s117
      %p121 = scmp.eq.s32.totalorder %s18, 0
      %p122 = por %p120, %p121
      %p123 = scmp.ne.s32.totalorder %s115, %s117
      %p124 = scmp.eq.s32.totalorder %s23, 1
      %p125 = por %p123, %p124
      %p126 = scmp.ne.s32.totalorder %s117, %s118
      %p127 = scmp.eq.s32.totalorder %s23, 0
      %p128 = por %p126, %p127
      %p129 = scmp.ne.s32.totalorder %s117, %s118
      %p130 = scmp.eq.s32.totalorder %s24, 1
      %p131 = por %p129, %p130
      %p133 = scmp.ne.s32.totalorder %s118, %s132
      %p134 = scmp.eq.s32.totalorder %s24, 0
      %p135 = por %p133, %p134
      %s136 = ssub.s32 %s18, %s25
      %p137 = scmp.eq.s32.totalorder %s136, 0
      %s139 = sadd.s32 %s138, 1
      %s140 = scalar_select %p137, %s138, %s139
      %p143 = pneg %p137
      %p144 = scmp.eq.s32.totalorder %s18, 1
      %p145 = por %p143, %p144
      %p146 = scmp.ne.s32.totalorder %s138, %s141
      %p147 = scmp.eq.s32.totalorder %s18, 0
      %p148 = por %p146, %p147
      %p149 = scmp.ne.s32.totalorder %s138, %s141
      %p150 = scmp.eq.s32.totalorder %s23, 1
      %p151 = por %p149, %p150
      %p152 = scmp.ne.s32.totalorder %s141, %s142
      %p153 = scmp.eq.s32.totalorder %s23, 0
      %p154 = por %p152, %p153
      %p155 = scmp.ne.s32.totalorder %s141, %s142
      %p156 = scmp.eq.s32.totalorder %s24, 1
      %p157 = por %p155, %p156
      %p159 = scmp.ne.s32.totalorder %s142, %s158
      %p160 = scmp.eq.s32.totalorder %s24, 0
      %p161 = por %p159, %p160
      %p162 = scmp.le.s32.totalorder 1, %s18
      %p163 = scmp.lt.s32.totalorder %s18, 3
      %p164 = pnand %p162, %p163
      %p165 = pneg %p164
      // Predicated region
      $region9: #{tpu_custom_call.1} parent=5 // pred_check
        _
      $region10: #{tpu_custom_call.1} parent=5 // pred_check_branch
        %167 = sbr.rel (%p164) target = $region12
      $region11: #{tpu_custom_call.1} parent=5 // pred_region
        %s168 = ssub.s32 %s18, 1
        // Predicated region
        $region13: #{tpu_custom_call.1} parent=11 // pred_check
          %p169 = pneg %p65
        $region14: #{tpu_custom_call.1} parent=11 // pred_check_branch
          %171 = sbr.rel (%p169) target = $region16
        $region15: #{tpu_custom_call.1} parent=11 // pred_region
          %s173 = ssub.s32 1024, 1024
          %174 = vsyncadd [#allocation6], %s173
          %s175 = sshll.u32 [#allocation5], 4
          %s176 = int_to_ptr.vmem [resolvable:$true] %s175
          %181 = dma.hbm_to_vmem [thread:$0]  %s1, 1024, %s176, [#allocation6], 256, 256, 16
        $region16: #{tpu_custom_call.1} parent=11 // pred_fallthru
          _
        // Predicated region
        $region17: #{tpu_custom_call.1} parent=11 // pred_check
          %p182 = pneg %p86
        $region18: #{tpu_custom_call.1} parent=11 // pred_check_branch
          %184 = sbr.rel (%p182) target = $region20
        $region19: #{tpu_custom_call.1} parent=11 // pred_region
          _
        $region20: #{tpu_custom_call.1} parent=11 // pred_fallthru
          _
        // Predicated region
        $region21: #{tpu_custom_call.1} parent=11 // pred_check
          %p185 = pneg %p107
        $region22: #{tpu_custom_call.1} parent=11 // pred_check_branch
          %187 = sbr.rel (%p185) target = $region24
        $region23: #{tpu_custom_call.1} parent=11 // pred_region
          %s189 = ssub.s32 4096, 4096
          %190 = vsyncadd [#allocation6], %s189
          %s191 = sshll.u32 [#allocation7], 4
          %s192 = int_to_ptr.vmem [resolvable:$true] %s191
          %197 = dma.hbm_to_vmem [thread:$0]  %s3, 4096, %s192, [#allocation6], 128, 128, 8
        $region24: #{tpu_custom_call.1} parent=11 // pred_fallthru
          _
        // Predicated region
        $region25: #{tpu_custom_call.1} parent=11 // pred_check
          %p198 = pneg %p128
        $region26: #{tpu_custom_call.1} parent=11 // pred_check_branch
          %200 = sbr.rel (%p198) target = $region28
        $region27: #{tpu_custom_call.1} parent=11 // pred_region
          _
        $region28: #{tpu_custom_call.1} parent=11 // pred_fallthru
          _
      $region12: #{tpu_custom_call.1} parent=5 // pred_fallthru
        _
      %p201 = scmp.lt.s32.totalorder %s18, 2
      // Predicated region
      $region29: #{tpu_custom_call.1} parent=5 // pred_check
        %p202 = pneg %p201
      $region30: #{tpu_custom_call.1} parent=5 // pred_check_branch
        %204 = sbr.rel (%p202) target = $region32
      $region31: #{tpu_custom_call.1} parent=5 // pred_region
        // Predicated region
        $region33: #{tpu_custom_call.1} parent=31 // pred_check
          %p205 = pneg %p38
        $region34: #{tpu_custom_call.1} parent=31 // pred_check_branch
          %207 = sbr.rel (%p205) target = $region36
        $region35: #{tpu_custom_call.1} parent=31 // pred_region
          %s208 = sand.u32 %s28, 1
          %s209 = scalar_lea.sflag [#allocation3], %s208
          %s210 = sand.u32 %s28, 1
          %s211 = smul.addr %s210, 8
          %s212 = scalar_lea.vmem [#allocation2], %s211
          %s214 = ssub.s32 128, 128
          %215 = vsyncadd %s209, %s214
          %s216 = smul.addr %s18, 128
          %s217 = scalar_lea.hbm %s0, %s216
          %s219 = sshll.u32 %s212, 4
          %s220 = int_to_ptr.vmem [resolvable:$true] %s219
          %222 = dma.hbm_to_vmem [thread:$0]  %s217, 128, %s220, %s209
        $region36: #{tpu_custom_call.1} parent=31 // pred_fallthru
          _
      $region32: #{tpu_custom_call.1} parent=5 // pred_fallthru
        _
      %p223 = scmp.le.s32.totalorder 1, %s18
      %p224 = scmp.lt.s32.totalorder %s18, 3
      %p225 = pnand %p223, %p224
      %p226 = pneg %p225
      // Predicated region
      $region37: #{tpu_custom_call.1} parent=5 // pred_check
        _
      $region38: #{tpu_custom_call.1} parent=5 // pred_check_branch
        %228 = sbr.rel (%p225) target = $region40
      $region39: #{tpu_custom_call.1} parent=5 // pred_region
        %s229 = ssub.s32 %s18, 1
        %s230 = sand.u32 %s31, 1
        %s231 = scalar_lea.sflag [#allocation3], %s230
        %s232 = sand.u32 %s31, 1
        %s233 = smul.addr %s232, 8
        %s234 = scalar_lea.vmem [#allocation2], %s233
        // Predicated region
        $region41: #{tpu_custom_call.1} parent=39 // pred_check
          %p235 = pneg %p44
        $region42: #{tpu_custom_call.1} parent=39 // pred_check_branch
          %237 = sbr.rel (%p235) target = $region44
        $region43: #{tpu_custom_call.1} parent=39 // pred_region
          %238 = dma.done %s231, 128
        $region44: #{tpu_custom_call.1} parent=39 // pred_fallthru
          _
        // Predicated region
        $region45: #{tpu_custom_call.1} parent=39 // pred_check
          %p239 = pneg %p65
        $region46: #{tpu_custom_call.1} parent=39 // pred_check_branch
          %241 = sbr.rel (%p239) target = $region48
        $region47: #{tpu_custom_call.1} parent=39 // pred_region
          %242 = dma.done [#allocation6], 1024
        $region48: #{tpu_custom_call.1} parent=39 // pred_fallthru
          _
        // Predicated region
        $region49: #{tpu_custom_call.1} parent=39 // pred_check
          %p243 = pneg %p107
        $region50: #{tpu_custom_call.1} parent=39 // pred_check_branch
          %245 = sbr.rel (%p243) target = $region52
        $region51: #{tpu_custom_call.1} parent=39 // pred_region
          %246 = dma.done [#allocation6], 4096
        $region52: #{tpu_custom_call.1} parent=39 // pred_fallthru
          _
        %s247 = sand.u32 %s31, 1
        %s248 = scalar_lea.sflag [#allocation3], %s247
        %s249 = sand.u32 %s31, 1
        %s250 = smul.addr %s249, 8
        %s251 = scalar_lea.vmem [#allocation2], %s250
        %p252 = pneg %p44
        %p253 = pneg %p41
        %p254 = pneg %p65
        %p255 = pneg %p62
        %p256 = pneg %p86
        %p257 = pneg %p83
        %p258 = pneg %p107
        %p259 = pneg %p104
        %p260 = pneg %p128
        %p261 = pneg %p125
        %p262 = pneg %p154
        %p263 = pneg %p151
        %s264 = sand.u32 %s141, 1
        %s265 = scalar_lea.sflag [#allocation4], %s264
        %s266 = sand.u32 %s141, 1
        %s267 = smul.addr %s266, 8
        %s268 = scalar_lea.vmem [#allocation8], %s267
        %v269 = vld [vmem:[%s234] sm:$0xff]
        %v270 = vld [vmem:[#allocation5] sm:$0xff]
        %v271 = vld [vmem:[#allocation5 + $0x8] sm:$0xff]
        %v272 = vld [vmem:[#allocation5 + $0x10] sm:$0xff]
        %v273 = vld [vmem:[#allocation5 + $0x18] sm:$0xff]
        %v274 = vld [vmem:[#allocation5 + $0x20] sm:$0xff]
        %v275 = vld [vmem:[#allocation5 + $0x28] sm:$0xff]
        %v276 = vld [vmem:[#allocation5 + $0x30] sm:$0xff]
        %v277 = vld [vmem:[#allocation5 + $0x38] sm:$0xff]
        %v278 = vld [vmem:[%s2] sm:$0x3]
        %v280 = vlaneseq
        %v281 = vshrl.u32 %v280, 7
        %v282 = vsub.s32 0, %v281
        %v283 = vrot.slane %v278, %v282
        %v284 = vlaneseq
        %v285 = vshrl.u32 %v284, 7
        %v286 = vsub.s32 1, %v285
        %v287 = vrot.slane %v278, %v286
        %vm290 = vcmask 261120
        %v292 = vsel %vm290, %v269, 0
        %294 = vmatprep.subr.mxu0 %v271
        %295 = vmatpush1.msra.mxu0 %v270
        %296 = vmatprep.subr.mxu0 %v273
        %297 = vmatpush1.msra.mxu0 %v272
        %298 = vmatprep.subr.mxu0 %v275
        %299 = vmatpush1.msra.mxu0 %v274
        %300 = vmatprep.subr.mxu0 %v277
        %301 = vmatpush1.msra.mxu0 %v276
        %302 = vmatprep.subr.mxu0 0.0
        %303 = vmatpush1.msra.mxu0 0.0
        %304 = vmatprep.subr.mxu0 0.0
        %305 = vmatpush1.msra.mxu0 0.0
        %306 = vmatprep.subr.mxu0 0.0
        %307 = vmatpush1.msra.mxu0 0.0
        %308 = vmatprep.subr.mxu0 0.0
        %309 = vmatpush1.msra.mxu0 0.0
        %310 = vmatprep.subr.mxu0 0.0
        %311 = vmatpush1.msra.mxu0 0.0
        %312 = vmatprep.subr.mxu0 0.0
        %313 = vmatpush1.msra.mxu0 0.0
        %314 = vmatprep.subr.mxu0 0.0
        %315 = vmatpush1.msra.mxu0 0.0
        %316 = vmatprep.subr.mxu0 0.0
        %317 = vmatpush1.msra.mxu0 0.0
        %318 = vmatprep.subr.mxu0 0.0
        %319 = vmatpush1.msra.mxu0 0.0
        %320 = vmatprep.subr.mxu0 0.0
        %321 = vmatpush1.msra.mxu0 0.0
        %322 = vmatprep.subr.mxu0 0.0
        %323 = vmatpush1.msra.mxu0 0.0
        %324 = vmatprep.subr.mxu0 0.0
        %325 = vmatpush1.msra.mxu0 0.0
        %326 = vmatprep.subr.mxu0 0.0
        %327 = vmatpush1.msra.mxu0 0.0
        %328 = vmatprep.subr.mxu0 0.0
        %329 = vmatpush1.msra.mxu0 0.0
        %330 = vmatprep.subr.mxu0 0.0
        %331 = vmatpush1.msra.mxu0 0.0
        %332 = vmatprep.subr.mxu0 0.0
        %333 = vmatpush1.msra.mxu0 0.0
        %334 = vmatprep.subr.mxu0 0.0
        %335 = vmatpush1.msra.mxu0 0.0
        %336 = vmatprep.subr.mxu0 0.0
        %337 = vmatpush1.msra.mxu0 0.0
        %338 = vmatprep.subr.mxu0 0.0
        %339 = vmatpush1.msra.mxu0 0.0
        %340 = vmatprep.subr.mxu0 0.0
        %341 = vmatpush1.msra.mxu0 0.0
        %342 = vmatprep.subr.mxu0 0.0
        %343 = vmatpush1.msra.mxu0 0.0
        %344 = vmatprep.subr.mxu0 0.0
        %345 = vmatpush1.msra.mxu0 0.0
        %346 = vmatprep.subr.mxu0 0.0
        %347 = vmatpush1.msra.mxu0 0.0
        %348 = vmatprep.subr.mxu0 0.0
        %349 = vmatpush1.msra.mxu0 0.0
        %350 = vmatprep.subr.mxu0 0.0
        %351 = vmatpush1.msra.mxu0 0.0
        %352 = vmatprep.subr.mxu0 0.0
        %353 = vmatpush1.msra.mxu0 0.0
        %354 = vmatprep.subr.mxu0 0.0
        %355 = vmatpush1.msra.mxu0 0.0
        %356 = vmatprep.subr.mxu0 0.0
        %357 = vmatpush1.msra.mxu0 0.0
        %358 = vmatprep.mubr.f32.mxu0 0.0
        %359 = vmatmul.mubr.f32.gmra.mrb[0].mxu0 %v292
        %v360 = vpop.f32.mrb[0].mxu0
        %v361 = vadd.f32 %v283, %v360
        %v362 = vpop.f32.mrb[0].mxu0
        %v363 = vadd.f32 %v287, %v362
        %364 = vdwg.mxu0
        %v365 = vmax.f32 %v361, 0.0
        %v366 = vmax.f32 %v363, 0.0
        %v367 = vld [vmem:[#allocation7] sm:$0xff]
        %v368 = vld [vmem:[#allocation7 + $0x8] sm:$0xff]
        %v369 = vld [vmem:[#allocation7 + $0x10] sm:$0xff]
        %v370 = vld [vmem:[#allocation7 + $0x18] sm:$0xff]
        %v371 = vld [vmem:[#allocation7 + $0x20] sm:$0xff]
        %v372 = vld [vmem:[#allocation7 + $0x28] sm:$0xff]
        %v373 = vld [vmem:[#allocation7 + $0x30] sm:$0xff]
        %v374 = vld [vmem:[#allocation7 + $0x38] sm:$0xff]
        %v375 = vld [vmem:[#allocation7 + $0x40] sm:$0xff]
        %v376 = vld [vmem:[#allocation7 + $0x48] sm:$0xff]
        %v377 = vld [vmem:[#allocation7 + $0x50] sm:$0xff]
        %v378 = vld [vmem:[#allocation7 + $0x58] sm:$0xff]
        %v379 = vld [vmem:[#allocation7 + $0x60] sm:$0xff]
        %v380 = vld [vmem:[#allocation7 + $0x68] sm:$0xff]
        %v381 = vld [vmem:[#allocation7 + $0x70] sm:$0xff]
        %v382 = vld [vmem:[#allocation7 + $0x78] sm:$0xff]
        %v383 = vld [vmem:[#allocation7 + $0x80] sm:$0xff]
        %v384 = vld [vmem:[#allocation7 + $0x88] sm:$0xff]
        %v385 = vld [vmem:[#allocation7 + $0x90] sm:$0xff]
        %v386 = vld [vmem:[#allocation7 + $0x98] sm:$0xff]
        %v387 = vld [vmem:[#allocation7 + $0xa0] sm:$0xff]
        %v388 = vld [vmem:[#allocation7 + $0xa8] sm:$0xff]
        %v389 = vld [vmem:[#allocation7 + $0xb0] sm:$0xff]
        %v390 = vld [vmem:[#allocation7 + $0xb8] sm:$0xff]
        %v391 = vld [vmem:[#allocation7 + $0xc0] sm:$0xff]
        %v392 = vld [vmem:[#allocation7 + $0xc8] sm:$0xff]
        %v393 = vld [vmem:[#allocation7 + $0xd0] sm:$0xff]
        %v394 = vld [vmem:[#allocation7 + $0xd8] sm:$0xff]
        %v395 = vld [vmem:[#allocation7 + $0xe0] sm:$0xff]
        %v396 = vld [vmem:[#allocation7 + $0xe8] sm:$0xff]
        %v397 = vld [vmem:[#allocation7 + $0xf0] sm:$0xff]
        %v398 = vld [vmem:[#allocation7 + $0xf8] sm:$0xff]
        %v399 = vld [vmem:[%s4] sm:$0x1]
        %v401 = vlaneseq
        %v402 = vshrl.u32 %v401, 7
        %v403 = vsub.s32 0, %v402
        %v404 = vrot.slane %v399, %v403
        %406 = vmatprep.subr.mxu0 0.0
        %407 = vmatpush1.msra.mxu0 %v367
        %408 = vmatprep.subr.mxu0 0.0
        %409 = vmatpush1.msra.mxu0 %v368
        %410 = vmatprep.subr.mxu0 0.0
        %411 = vmatpush1.msra.mxu0 %v369
        %412 = vmatprep.subr.mxu0 0.0
        %413 = vmatpush1.msra.mxu0 %v370
        %414 = vmatprep.subr.mxu0 0.0
        %415 = vmatpush1.msra.mxu0 %v371
        %416 = vmatprep.subr.mxu0 0.0
        %417 = vmatpush1.msra.mxu0 %v372
        %418 = vmatprep.subr.mxu0 0.0
        %419 = vmatpush1.msra.mxu0 %v373
        %420 = vmatprep.subr.mxu0 0.0
        %421 = vmatpush1.msra.mxu0 %v374
        %422 = vmatprep.subr.mxu0 0.0
        %423 = vmatpush1.msra.mxu0 %v375
        %424 = vmatprep.subr.mxu0 0.0
        %425 = vmatpush1.msra.mxu0 %v376
        %426 = vmatprep.subr.mxu0 0.0
        %427 = vmatpush1.msra.mxu0 %v377
        %428 = vmatprep.subr.mxu0 0.0
        %429 = vmatpush1.msra.mxu0 %v378
        %430 = vmatprep.subr.mxu0 0.0
        %431 = vmatpush1.msra.mxu0 %v379
        %432 = vmatprep.subr.mxu0 0.0
        %433 = vmatpush1.msra.mxu0 %v380
        %434 = vmatprep.subr.mxu0 0.0
        %435 = vmatpush1.msra.mxu0 %v381
        %436 = vmatprep.subr.mxu0 0.0
        %437 = vmatpush1.msra.mxu0 %v382
        %438 = vmatprep.subr.mxu0 0.0
        %439 = vmatpush1.msra.mxu0 %v383
        %440 = vmatprep.subr.mxu0 0.0
        %441 = vmatpush1.msra.mxu0 %v384
        %442 = vmatprep.subr.mxu0 0.0
        %443 = vmatpush1.msra.mxu0 %v385
        %444 = vmatprep.subr.mxu0 0.0
        %445 = vmatpush1.msra.mxu0 %v386
        %446 = vmatprep.subr.mxu0 0.0
        %447 = vmatpush1.msra.mxu0 %v387
        %448 = vmatprep.subr.mxu0 0.0
        %449 = vmatpush1.msra.mxu0 %v388
        %450 = vmatprep.subr.mxu0 0.0
        %451 = vmatpush1.msra.mxu0 %v389
        %452 = vmatprep.subr.mxu0 0.0
        %453 = vmatpush1.msra.mxu0 %v390
        %454 = vmatprep.subr.mxu0 0.0
        %455 = vmatpush1.msra.mxu0 %v391
        %456 = vmatprep.subr.mxu0 0.0
        %457 = vmatpush1.msra.mxu0 %v392
        %458 = vmatprep.subr.mxu0 0.0
        %459 = vmatpush1.msra.mxu0 %v393
        %460 = vmatprep.subr.mxu0 0.0
        %461 = vmatpush1.msra.mxu0 %v394
        %462 = vmatprep.subr.mxu0 0.0
        %463 = vmatpush1.msra.mxu0 %v395
        %464 = vmatprep.subr.mxu0 0.0
        %465 = vmatpush1.msra.mxu0 %v396
        %466 = vmatprep.subr.mxu0 0.0
        %467 = vmatpush1.msra.mxu0 %v397
        %468 = vmatprep.subr.mxu0 0.0
        %469 = vmatpush1.msra.mxu0 %v398
        %470 = vmatprep.mubr.f32.mxu0 %v366
        %471 = vmatmul.mubr.f32.gmra.mrb[0].mxu0 %v365
        %v472 = vpop.f32.mrb[0].mxu0
        %v473 = vadd.f32 %v404, %v472
        %v474 = vpop.f32.mrb[0].mxu0
        %475 = vdwg.mxu0
        %v476 = vlaneseq
        %v477 = vand.u32 %v476, 127
        %vm478 = vcmp.lt.s32.totalorder %v477, 16
        %v479 = vsel %vm478, %v473, -inf
        %480 = vmax.xlane.f32.xlu0 %v479
        %v481 = vpop.xlane.xlu0 %480
        %v482 = vsub.f32 %v473, %v481
        %v483 = vmul.f32 %v482, 1.442695
        %v484 = vpow.pop %v483
        %v485 = vsel %vm478, %v484, 0.0
        %486 = vadd.xlane.f32.xlu0 %v485
        %v487 = vpop.xlane.xlu0 %486
        %v488 = vrcp.pop %v487
        %v489 = vlog2.pop %v487
        %v490 = vmul.f32 %v489, 0.6931472
        %v491 = vsub.f32 %v482, %v490
        %v492 = vsel %vm478, %v491, 0.0
        %v493 = vmul.f32 %v485, %v488
        %vm494 = vcmp.eq.s32.totalorder %v477, 16
        %v495 = vsel %vm494, %v473, 0.0
        %v496 = vtanh.pop %v495
        %v497 = vadd.f32 %v493, %v496
        %498 = vrot.lane.b32.xlu0 %v497, 16
        %v499 = vpop.permute.xlu0 %498
        %v500 = vadd.f32 %v492, %v499
        %501 = vst [vmem:[%s268] sm:$0xff] %v500
        %s502 = sand.u32 %s141, 1
        %s503 = scalar_lea.sflag [#allocation4], %s502
        %s504 = sand.u32 %s141, 1
        %s505 = smul.addr %s504, 8
        %s506 = scalar_lea.vmem [#allocation8], %s505
        // Predicated region
        $region53: #{tpu_custom_call.1} parent=39 // pred_check
          %p507 = pneg %p151
        $region54: #{tpu_custom_call.1} parent=39 // pred_check_branch
          %509 = sbr.rel (%p507) target = $region56
        $region55: #{tpu_custom_call.1} parent=39 // pred_region
          %s511 = ssub.s32 128, 128
          %512 = vsyncadd %s503, %s511
          %s513 = smul.addr %s23, 128
          %s514 = scalar_lea.hbm %s5, %s513
          %s516 = sshll.u32 %s506, 4
          %s517 = int_to_ptr.vmem [resolvable:$true] %s516
          %519 = dma.vmem_to_hbm [thread:$0]  %s517, 128, %s514, %s503
        $region56: #{tpu_custom_call.1} parent=39 // pred_fallthru
          _
      $region40: #{tpu_custom_call.1} parent=5 // pred_fallthru
        _
      %p520 = scmp.le.s32.totalorder 2, %s18
      // Predicated region
      $region57: #{tpu_custom_call.1} parent=5 // pred_check
        %p521 = pneg %p520
      $region58: #{tpu_custom_call.1} parent=5 // pred_check_branch
        %523 = sbr.rel (%p521) target = $region60
      $region59: #{tpu_custom_call.1} parent=5 // pred_region
        %s524 = ssub.s32 %s18, 2
        // Predicated region
        $region61: #{tpu_custom_call.1} parent=59 // pred_check
          %p525 = pneg %p157
        $region62: #{tpu_custom_call.1} parent=59 // pred_check_branch
          %527 = sbr.rel (%p525) target = $region64
        $region63: #{tpu_custom_call.1} parent=59 // pred_region
          %s528 = sand.u32 %s142, 1
          %s529 = scalar_lea.sflag [#allocation4], %s528
          %s530 = sand.u32 %s142, 1
          %s531 = smul.addr %s530, 8
          %s532 = scalar_lea.vmem [#allocation8], %s531
          %533 = dma.done %s529, 128
        $region64: #{tpu_custom_call.1} parent=59 // pred_fallthru
          _
      $region60: #{tpu_custom_call.1} parent=5 // pred_fallthru
        _
    $region6: #{tpu_custom_call.1} parent=1 // loop_footer
      %s22 = sadd.s32 1, %s18
    $region7: #{tpu_custom_call.1} parent=1 // loop_footer_branch
      %17 = sbr.rel target = $region3
    $region8: #{tpu_custom_call.1} parent=1 // loop_exit
      _
    %534 = vsyncpa [#allocation3], 1
    %s535 = scalar_lea.sflag [#allocation3], 1
    %536 = vsyncpa %s535, 1
    %537 = vsyncpa [#allocation6], 1
    %538 = vsyncpa [#allocation4], 1
    %s539 = scalar_lea.sflag [#allocation4], 1
    %540 = vsyncpa %s539, 1

</llo_original>
